<compile_context>
chip_gen: v7x
topology: tpu7x:2x2x1
jax: 0.10.0
libtpu: 0.0.40
codegen_flags: <defaults>
</compile_context>

<pallas_src>
import functools

import jax
import jax.numpy as jnp
from jax.experimental import pallas as pl
from jax.experimental.pallas import tpu as pltpu

LN_EPS = 1e-5


def _round_up(x, m):
    return ((x + m - 1) // m) * m


def _choose_tiling(B, batch_tile):
    """Pick (bt, B_pad, num_steps).

    bt is a multiple of 128 (lane-dense), padding waste stays small
    (bt = round_up(ceil(B / num_steps), 128)), and num_steps is >= 2 and even
    whenever the batch allows it so both v7x TensorCores are used.
    """
    bt_cap = max(128, _round_up(int(batch_tile), 128))
    B128 = _round_up(B, 128)
    num_steps = max(1, pl.cdiv(B128, bt_cap))
    if B128 >= 256:
        num_steps = max(num_steps, 2)
        if num_steps % 2:
            num_steps += 1
    bt = _round_up(pl.cdiv(B, num_steps), 128)
    return bt, bt * num_steps, num_steps


def _drift_kernel(x_ref, *refs, num_hidden):
    """x_ref: (bt, Din) input tile in the module's native (batch, feature) layout.

    refs: [W0, bgb0, ..., W_{nh-1}, bgb_{nh-1}, W_out, b_out, o_ref].
    All activations are kept lane-dense as (features, bt); only the final
    store transposes the small (Dout, bt) result into the (bt, Dout) tile.
    """
    o_ref = refs[-1]
    p = refs[:-1]

    def layer_matmul(w, x, first):
        # first layer: contract on x's last (feature) axis  -> (out, bt)
        # later layers: x is already (features, bt), contract on its dim 0.
        dnums = (((1,), (1,)), ((), ())) if first else (((1,), (0,)), ((), ()))
        return jax.lax.dot_general(w, x.astype(w.dtype), dnums,
                                   preferred_element_type=jnp.float32)

    x = x_ref[...]
    first = True
    for li in range(num_hidden):
        w = p[2 * li][...]                     # (out, in), compute dtype
        bgb = p[2 * li + 1][...]               # (out, 3) f32: [bias, gamma, beta]
        b, gamma, beta = bgb[:, 0:1], bgb[:, 1:2], bgb[:, 2:3]

        h = layer_matmul(w, x, first) + b      # (out, bt), f32 accumulation

        # Two-pass LayerNorm over the feature (sublane) axis, f32 stats.
        inv_n = 1.0 / h.shape[0]
        mu = jnp.sum(h, axis=0, keepdims=True) * inv_n
        hc = h - mu
        var = jnp.sum(hc * hc, axis=0, keepdims=True) * inv_n
        x = jnp.tanh(hc * jax.lax.rsqrt(var + LN_EPS) * gamma + beta)   # EUP
        first = False

    w = p[2 * num_hidden][...]                 # (Dout, hidden) compute dtype
    b = p[2 * num_hidden + 1][...]             # (Dout, 1) f32
    out = layer_matmul(w, x, first) + b        # (Dout, bt) f32
    # In-kernel transpose of the small result so the kernel writes the
    # module's native (bt, Dout) layout -> no wrapper-side HBM transpose pass.
    o_ref[...] = out.T.astype(o_ref.dtype)


def ambient_drift_forward(z, layers, *, batch_tile=4096,
                          compute_dtype=jnp.bfloat16, out_dtype=jnp.float32,
                          vmem_limit_bytes=None):
    """z: (B, Din) float32.  layers: [(W, b, gamma, beta)] * num_hidden + [(W, b)],
    with W in PyTorch (out_features, in_features) orientation.
    Returns (B, Dout) in out_dtype (f32 by default; bf16 is a v5e bandwidth win)."""
    B, Din = z.shape
    num_hidden = len(layers) - 1
    Dout = layers[-1][0].shape[0]

    bt, B_pad, num_steps = _choose_tiling(B, batch_tile)
    x = z
    if B_pad != B:
        # Cheap row pad only (zero rows flow through LN finitely, sliced off);
        # no transpose / dtype-convert pass over the input in HBM.
        x = jnp.pad(x, ((0, B_pad - B), (0, 0)))

    # Pack params: weights in compute dtype, (bias, gamma, beta) fused per hidden layer.
    kparams = []
    for (W, b, g, be) in layers[:-1]:
        kparams.append(W.astype(compute_dtype))                              # (out, in)
        kparams.append(jnp.stack([b, g, be], axis=1).astype(jnp.float32))    # (out, 3)
    W_last, b_last = layers[-1]
    kparams.append(W_last.astype(compute_dtype))
    kparams.append(b_last[:, None].astype(jnp.float32))                      # (Dout, 1)

    x_spec = pl.BlockSpec((bt, Din), lambda i: (i, 0))
    full = lambda a: pl.BlockSpec(a.shape, lambda i: (0, 0))   # VMEM-resident once
    out_spec = pl.BlockSpec((bt, Dout), lambda i: (i, 0))

    cp_kwargs = dict(dimension_semantics=("parallel",))
    if vmem_limit_bytes is not None:
        cp_kwargs["vmem_limit_bytes"] = vmem_limit_bytes

    out = pl.pallas_call(
        functools.partial(_drift_kernel, num_hidden=num_hidden),
        out_shape=jax.ShapeDtypeStruct((B_pad, Dout), out_dtype),
        grid_spec=pltpu.PrefetchScalarGridSpec(
            num_scalar_prefetch=0,
            grid=(num_steps,),
            in_specs=[x_spec] + [full(a) for a in kparams],
            out_specs=out_spec,
        ),
        compiler_params=pltpu.CompilerParams(**cp_kwargs),
    )(x, *kparams)

    return out if B_pad == B else out[:B]


def init_params(key, input_dim, hidden_dims, output_dim):
    """PyTorch-style init: W (out, in), b (out,), uniform +-1/sqrt(fan_in); LN gamma=1, beta=0."""
    dims = [input_dim] + hidden_dims + [output_dim]
    layers = []
    for li in range(len(dims) - 1):
        fan_in, fan_out = dims[li], dims[li + 1]
        key, kw, kb = jax.random.split(key, 3)
        bound = 1.0 / (fan_in ** 0.5)
        W = jax.random.uniform(kw, (fan_out, fan_in), jnp.float32, -bound, bound)
        b = jax.random.uniform(kb, (fan_out,), jnp.float32, -bound, bound)
        if li < len(dims) - 2:
            layers.append((W, b,
                           jnp.ones((fan_out,), jnp.float32),
                           jnp.zeros((fan_out,), jnp.float32)))
        else:
            layers.append((W, b))
    return layers


def reference_forward(z, layers):
    h = z
    for (W, b, g, be) in layers[:-1]:
        h = h @ W.T + b
        mu = jnp.mean(h, axis=-1, keepdims=True)
        var = jnp.mean((h - mu) ** 2, axis=-1, keepdims=True)
        h = jnp.tanh((h - mu) * jax.lax.rsqrt(var + LN_EPS) * g + be)
    W, b = layers[-1]
    return h @ W.T + b


if __name__ == "__main__":
    input_dim, output_dim = 16, 16
    hidden_dims = [32, 32]
    batch = 8

    key = jax.random.PRNGKey(0)
    kz, kp = jax.random.split(key)
    z = jax.random.normal(kz, (batch, input_dim), jnp.float32)
    layers = init_params(kp, input_dim, hidden_dims, output_dim)

    ref = reference_forward(z, layers)

    # Exact-precision path (f32 matmul operands) -> tight check.
    out_f32 = jax.block_until_ready(
        ambient_drift_forward(z, layers, compute_dtype=jnp.float32))
    assert out_f32.shape == (batch, output_dim)
    assert jnp.allclose(out_f32, ref, atol=1e-5, rtol=1e-5)

    # Default fast path (bf16 matmul operands, f32 accumulation/LN) -> loose check.
    out_bf16 = jax.block_until_ready(ambient_drift_forward(z, layers))
    assert out_bf16.shape == (batch, output_dim)
    assert jnp.allclose(out_bf16, ref, atol=1e-1, rtol=1e-1)

    # Multi-step grid + ragged batch (exercises padding, grid > 1, megacore path).
    z2 = jax.random.normal(jax.random.PRNGKey(1), (400, input_dim), jnp.float32)
    ref2 = reference_forward(z2, layers)
    out2 = jax.block_until_ready(
        ambient_drift_forward(z2, layers, batch_tile=128, compute_dtype=jnp.float32))
    assert out2.shape == (400, output_dim)
    assert jnp.allclose(out2, ref2, atol=1e-5, rtol=1e-5)

    print("KERNEL_OK")
</pallas_src>

<mosaic_0001>
module attributes {stable_mosaic.version = 11 : i64} {
  func.func @_drift_kernel(%arg0: i32, %arg1: memref<128x16xf32, #tpu.memory_space<vmem>>, %arg2: memref<32x16xf32, #tpu.memory_space<vmem>>, %arg3: memref<32x3xf32, #tpu.memory_space<vmem>>, %arg4: memref<32x32xf32, #tpu.memory_space<vmem>>, %arg5: memref<32x3xf32, #tpu.memory_space<vmem>>, %arg6: memref<16x32xf32, #tpu.memory_space<vmem>>, %arg7: memref<16x1xf32, #tpu.memory_space<vmem>>, %arg8: memref<128x16xf32, #tpu.memory_space<vmem>>) attributes {dimension_semantics = [#tpu.dimension_semantics<parallel>], iteration_bounds = array<i64: 1>, scalar_prefetch = 0 : i64, scratch_operands = 0 : i64, tpu.core_type = #tpu.core_type<tc>, window_params = [{transform_indices = @transform_0, window_bounds = array<i64: 128, 16>}, {pipeline_mode = #tpu.pipeline_mode<synchronous>, transform_indices = @transform_1, window_bounds = array<i64: 32, 16>}, {pipeline_mode = #tpu.pipeline_mode<synchronous>, transform_indices = @transform_2, window_bounds = array<i64: 32, 3>}, {pipeline_mode = #tpu.pipeline_mode<synchronous>, transform_indices = @transform_3, window_bounds = array<i64: 32, 32>}, {pipeline_mode = #tpu.pipeline_mode<synchronous>, transform_indices = @transform_4, window_bounds = array<i64: 32, 3>}, {pipeline_mode = #tpu.pipeline_mode<synchronous>, transform_indices = @transform_5, window_bounds = array<i64: 16, 32>}, {pipeline_mode = #tpu.pipeline_mode<synchronous>, transform_indices = @transform_6, window_bounds = array<i64: 16, 1>}, {transform_indices = @transform_7, window_bounds = array<i64: 128, 16>}]} {
    %c0 = arith.constant 0 : index
    %c0_0 = arith.constant 0 : index
    %0 = vector.load %arg1[%c0, %c0_0] : memref<128x16xf32, #tpu.memory_space<vmem>>, vector<128x16xf32>
    %c0_1 = arith.constant 0 : index
    %c0_2 = arith.constant 0 : index
    %1 = vector.load %arg2[%c0_1, %c0_2] : memref<32x16xf32, #tpu.memory_space<vmem>>, vector<32x16xf32>
    %c0_3 = arith.constant 0 : index
    %c0_4 = arith.constant 0 : index
    %2 = vector.load %arg3[%c0_3, %c0_4] : memref<32x3xf32, #tpu.memory_space<vmem>>, vector<32x3xf32>
    %3 = vector.extract_strided_slice %2 {offsets = [0, 0], sizes = [32, 1], strides = [1, 1]} : vector<32x3xf32> to vector<32x1xf32>
    %4 = vector.extract_strided_slice %2 {offsets = [0, 1], sizes = [32, 1], strides = [1, 1]} : vector<32x3xf32> to vector<32x1xf32>
    %5 = vector.extract_strided_slice %2 {offsets = [0, 2], sizes = [32, 1], strides = [1, 1]} : vector<32x3xf32> to vector<32x1xf32>
    %cst = arith.constant dense<0.000000e+00> : vector<32x128xf32>
    %6 = tpu.matmul %1, %0, %cst {dimension_numbers = #tpu.dot_dimension_numbers<[1], [1], [0], [0], [0, 0, 1, 0], [], []>} : vector<32x16xf32>, vector<128x16xf32>, vector<32x128xf32> -> vector<32x128xf32>
    %7 = vector.broadcast %3 : vector<32x1xf32> to vector<32x128xf32>
    %8 = arith.addf %6, %7 : vector<32x128xf32>
    %cst_5 = arith.constant dense<0.000000e+00> : vector<128xf32>
    %9 = vector.multi_reduction <add>, %8, %cst_5 [0] : vector<32x128xf32> to vector<128xf32>
    %10 = vector.shape_cast %9 : vector<128xf32> to vector<1x128xf32>
    %cst_6 = arith.constant 3.125000e-02 : f32
    %11 = vector.broadcast %cst_6 : f32 to vector<1x128xf32>
    %12 = arith.mulf %10, %11 : vector<1x128xf32>
    %13 = vector.broadcast %12 : vector<1x128xf32> to vector<32x128xf32>
    %14 = arith.subf %8, %13 : vector<32x128xf32>
    %15 = arith.mulf %14, %14 : vector<32x128xf32>
    %cst_7 = arith.constant dense<0.000000e+00> : vector<128xf32>
    %16 = vector.multi_reduction <add>, %15, %cst_7 [0] : vector<32x128xf32> to vector<128xf32>
    %17 = vector.shape_cast %16 : vector<128xf32> to vector<1x128xf32>
    %cst_8 = arith.constant 3.125000e-02 : f32
    %18 = vector.broadcast %cst_8 : f32 to vector<1x128xf32>
    %19 = arith.mulf %17, %18 : vector<1x128xf32>
    %cst_9 = arith.constant 9.99999974E-6 : f32
    %20 = vector.broadcast %cst_9 : f32 to vector<1x128xf32>
    %21 = arith.addf %19, %20 : vector<1x128xf32>
    %22 = math.rsqrt %21 : vector<1x128xf32>
    %23 = vector.broadcast %22 : vector<1x128xf32> to vector<32x128xf32>
    %24 = arith.mulf %14, %23 : vector<32x128xf32>
    %25 = vector.broadcast %4 : vector<32x1xf32> to vector<32x128xf32>
    %26 = arith.mulf %24, %25 : vector<32x128xf32>
    %27 = vector.broadcast %5 : vector<32x1xf32> to vector<32x128xf32>
    %28 = arith.addf %26, %27 : vector<32x128xf32>
    %29 = math.tanh %28 : vector<32x128xf32>
    %c0_10 = arith.constant 0 : index
    %c0_11 = arith.constant 0 : index
    %30 = vector.load %arg4[%c0_10, %c0_11] : memref<32x32xf32, #tpu.memory_space<vmem>>, vector<32x32xf32>
    %c0_12 = arith.constant 0 : index
    %c0_13 = arith.constant 0 : index
    %31 = vector.load %arg5[%c0_12, %c0_13] : memref<32x3xf32, #tpu.memory_space<vmem>>, vector<32x3xf32>
    %32 = vector.extract_strided_slice %31 {offsets = [0, 0], sizes = [32, 1], strides = [1, 1]} : vector<32x3xf32> to vector<32x1xf32>
    %33 = vector.extract_strided_slice %31 {offsets = [0, 1], sizes = [32, 1], strides = [1, 1]} : vector<32x3xf32> to vector<32x1xf32>
    %34 = vector.extract_strided_slice %31 {offsets = [0, 2], sizes = [32, 1], strides = [1, 1]} : vector<32x3xf32> to vector<32x1xf32>
    %cst_14 = arith.constant dense<0.000000e+00> : vector<32x128xf32>
    %35 = tpu.matmul %30, %29, %cst_14 {dimension_numbers = #tpu.dot_dimension_numbers<[1], [0], [0], [1], [0, 0, 1, 1], [], []>} : vector<32x32xf32>, vector<32x128xf32>, vector<32x128xf32> -> vector<32x128xf32>
    %36 = vector.broadcast %32 : vector<32x1xf32> to vector<32x128xf32>
    %37 = arith.addf %35, %36 : vector<32x128xf32>
    %cst_15 = arith.constant dense<0.000000e+00> : vector<128xf32>
    %38 = vector.multi_reduction <add>, %37, %cst_15 [0] : vector<32x128xf32> to vector<128xf32>
    %39 = vector.shape_cast %38 : vector<128xf32> to vector<1x128xf32>
    %cst_16 = arith.constant 3.125000e-02 : f32
    %40 = vector.broadcast %cst_16 : f32 to vector<1x128xf32>
    %41 = arith.mulf %39, %40 : vector<1x128xf32>
    %42 = vector.broadcast %41 : vector<1x128xf32> to vector<32x128xf32>
    %43 = arith.subf %37, %42 : vector<32x128xf32>
    %44 = arith.mulf %43, %43 : vector<32x128xf32>
    %cst_17 = arith.constant dense<0.000000e+00> : vector<128xf32>
    %45 = vector.multi_reduction <add>, %44, %cst_17 [0] : vector<32x128xf32> to vector<128xf32>
    %46 = vector.shape_cast %45 : vector<128xf32> to vector<1x128xf32>
    %cst_18 = arith.constant 3.125000e-02 : f32
    %47 = vector.broadcast %cst_18 : f32 to vector<1x128xf32>
    %48 = arith.mulf %46, %47 : vector<1x128xf32>
    %cst_19 = arith.constant 9.99999974E-6 : f32
    %49 = vector.broadcast %cst_19 : f32 to vector<1x128xf32>
    %50 = arith.addf %48, %49 : vector<1x128xf32>
    %51 = math.rsqrt %50 : vector<1x128xf32>
    %52 = vector.broadcast %51 : vector<1x128xf32> to vector<32x128xf32>
    %53 = arith.mulf %43, %52 : vector<32x128xf32>
    %54 = vector.broadcast %33 : vector<32x1xf32> to vector<32x128xf32>
    %55 = arith.mulf %53, %54 : vector<32x128xf32>
    %56 = vector.broadcast %34 : vector<32x1xf32> to vector<32x128xf32>
    %57 = arith.addf %55, %56 : vector<32x128xf32>
    %58 = math.tanh %57 : vector<32x128xf32>
    %c0_20 = arith.constant 0 : index
    %c0_21 = arith.constant 0 : index
    %59 = vector.load %arg6[%c0_20, %c0_21] : memref<16x32xf32, #tpu.memory_space<vmem>>, vector<16x32xf32>
    %c0_22 = arith.constant 0 : index
    %c0_23 = arith.constant 0 : index
    %60 = vector.load %arg7[%c0_22, %c0_23] : memref<16x1xf32, #tpu.memory_space<vmem>>, vector<16x1xf32>
    %cst_24 = arith.constant dense<0.000000e+00> : vector<16x128xf32>
    %61 = tpu.matmul %59, %58, %cst_24 {dimension_numbers = #tpu.dot_dimension_numbers<[1], [0], [0], [1], [0, 0, 1, 1], [], []>} : vector<16x32xf32>, vector<32x128xf32>, vector<16x128xf32> -> vector<16x128xf32>
    %62 = vector.broadcast %60 : vector<16x1xf32> to vector<16x128xf32>
    %63 = arith.addf %61, %62 : vector<16x128xf32>
    %64 = tpu.transpose %63, [1, 0] : vector<16x128xf32> -> vector<128x16xf32>
    %c0_25 = arith.constant 0 : index
    %c0_26 = arith.constant 0 : index
    %65 = vector.load %arg8[%c0_25, %c0_26] : memref<128x16xf32, #tpu.memory_space<vmem>>, vector<128x16xf32>
    tpu.vector_store %arg8[%c0_25, %c0_26], %64 {strides = array<i32>} : memref<128x16xf32, #tpu.memory_space<vmem>>, vector<128x16xf32>,
    return
  }
  func.func @transform_0(%arg0: i32) -> (i32, i32) {
    %c0_i32 = arith.constant 0 : i32
    %c0_i32_0 = arith.constant 0 : i32
    return %arg0, %c0_i32 : i32, i32
  }
  func.func @transform_1(%arg0: i32) -> (i32, i32) {
    %c0_i32 = arith.constant 0 : i32
    %c0_i32_0 = arith.constant 0 : i32
    %c0_i32_1 = arith.constant 0 : i32
    return %c0_i32, %c0_i32_0 : i32, i32
  }
  func.func @transform_2(%arg0: i32) -> (i32, i32) {
    %c0_i32 = arith.constant 0 : i32
    %c0_i32_0 = arith.constant 0 : i32
    %c0_i32_1 = arith.constant 0 : i32
    return %c0_i32, %c0_i32_0 : i32, i32
  }
  func.func @transform_3(%arg0: i32) -> (i32, i32) {
    %c0_i32 = arith.constant 0 : i32
    %c0_i32_0 = arith.constant 0 : i32
    %c0_i32_1 = arith.constant 0 : i32
    return %c0_i32, %c0_i32_0 : i32, i32
  }
  func.func @transform_4(%arg0: i32) -> (i32, i32) {
    %c0_i32 = arith.constant 0 : i32
    %c0_i32_0 = arith.constant 0 : i32
    %c0_i32_1 = arith.constant 0 : i32
    return %c0_i32, %c0_i32_0 : i32, i32
  }
  func.func @transform_5(%arg0: i32) -> (i32, i32) {
    %c0_i32 = arith.constant 0 : i32
    %c0_i32_0 = arith.constant 0 : i32
    %c0_i32_1 = arith.constant 0 : i32
    return %c0_i32, %c0_i32_0 : i32, i32
  }
  func.func @transform_6(%arg0: i32) -> (i32, i32) {
    %c0_i32 = arith.constant 0 : i32
    %c0_i32_0 = arith.constant 0 : i32
    %c0_i32_1 = arith.constant 0 : i32
    return %c0_i32, %c0_i32_0 : i32, i32
  }
  func.func @transform_7(%arg0: i32) -> (i32, i32) {
    %c0_i32 = arith.constant 0 : i32
    %c0_i32_0 = arith.constant 0 : i32
    return %arg0, %c0_i32 : i32, i32
  }
}

</mosaic_0001>

<llo_original>
// kernel: tpu_custom_call.1
$region0: #{tpu_custom_call.1}
  #allocation0 [shape = 'u32[]', space=smem, size = 0x4, offset = 0x4, fixed_abs, tag = 'smem constant byte address 0x4 - core index']
  #allocation1 [shape = 'u32[144,128]{1,0:T(1,128)}', space=vmem, size = 0x12000, scoped, tag = 'internal scratch']
  %s0 = inlined_call_operand.vmem [shape: f32[128,16], index: 0, kind: input, shape index: {}]
  %s1 = inlined_call_operand.vmem [shape: f32[32,16], index: 1, kind: input, shape index: {}]
  %s2 = inlined_call_operand.vmem [shape: f32[32,3], index: 2, kind: input, shape index: {}]
  %s3 = inlined_call_operand.vmem [shape: f32[32,32], index: 3, kind: input, shape index: {}]
  %s4 = inlined_call_operand.vmem [shape: f32[32,3], index: 4, kind: input, shape index: {}]
  %s5 = inlined_call_operand.vmem [shape: f32[16,32], index: 5, kind: input, shape index: {}]
  %s6 = inlined_call_operand.vmem [shape: f32[16,1], index: 6, kind: input, shape index: {}]
  %s7 = inlined_call_operand.vmem [shape: f32[128,16], index: 7, kind: output, shape index: {}]
  %s8 = sld [smem:[#allocation0]]
  $region38: #{tpu_custom_call.1} parent=0
    _
  %s10 = ssub.s32 1, %s8
  %s11 = scalar_select 0, %s10, %s8
  // Predicated region
  $region2: #{tpu_custom_call.1} parent=0 // pred_check
    _
  $region3: #{tpu_custom_call.1} parent=0 // pred_check_branch
    %13 = sbr.rel (0) target = $region5
  $region4: #{tpu_custom_call.1} parent=0 // pred_region
    _
  $region5: #{tpu_custom_call.1} parent=0 // pred_fallthru
    _
  // Predicated region
  $region6: #{tpu_custom_call.1} parent=0 // pred_check
    _
  $region7: #{tpu_custom_call.1} parent=0 // pred_check_branch
    %15 = sbr.rel (0) target = $region9
  $region8: #{tpu_custom_call.1} parent=0 // pred_region
    _
  $region9: #{tpu_custom_call.1} parent=0 // pred_fallthru
    _
  // Predicated region
  $region10: #{tpu_custom_call.1} parent=0 // pred_check
    _
  $region11: #{tpu_custom_call.1} parent=0 // pred_check_branch
    %17 = sbr.rel (0) target = $region13
  $region12: #{tpu_custom_call.1} parent=0 // pred_region
    _
  $region13: #{tpu_custom_call.1} parent=0 // pred_fallthru
    _
  // Predicated region
  $region14: #{tpu_custom_call.1} parent=0 // pred_check
    _
  $region15: #{tpu_custom_call.1} parent=0 // pred_check_branch
    %19 = sbr.rel (0) target = $region17
  $region16: #{tpu_custom_call.1} parent=0 // pred_region
    _
  $region17: #{tpu_custom_call.1} parent=0 // pred_fallthru
    _
  // Predicated region
  $region18: #{tpu_custom_call.1} parent=0 // pred_check
    _
  $region19: #{tpu_custom_call.1} parent=0 // pred_check_branch
    %21 = sbr.rel (0) target = $region21
  $region20: #{tpu_custom_call.1} parent=0 // pred_region
    _
  $region21: #{tpu_custom_call.1} parent=0 // pred_fallthru
    _
  // Predicated region
  $region22: #{tpu_custom_call.1} parent=0 // pred_check
    _
  $region23: #{tpu_custom_call.1} parent=0 // pred_check_branch
    %23 = sbr.rel (0) target = $region25
  $region24: #{tpu_custom_call.1} parent=0 // pred_region
    _
  $region25: #{tpu_custom_call.1} parent=0 // pred_fallthru
    _
  // Predicated region
  $region26: #{tpu_custom_call.1} parent=0 // pred_check
    _
  $region27: #{tpu_custom_call.1} parent=0 // pred_check_branch
    %25 = sbr.rel (0) target = $region29
  $region28: #{tpu_custom_call.1} parent=0 // pred_region
    _
  $region29: #{tpu_custom_call.1} parent=0 // pred_fallthru
    _
  %v26 = vld [vmem:[%s0] sm:$0xff]
  %v27 = vld [vmem:[%s0 + $0x8] sm:$0xff]
  %v28 = vld [vmem:[%s0 + $0x10] sm:$0xff]
  %v29 = vld [vmem:[%s0 + $0x18] sm:$0xff]
  %v30 = vld [vmem:[%s0 + $0x20] sm:$0xff]
  %v31 = vld [vmem:[%s0 + $0x28] sm:$0xff]
  %v32 = vld [vmem:[%s0 + $0x30] sm:$0xff]
  %v33 = vld [vmem:[%s0 + $0x38] sm:$0xff]
  %v34 = vld [vmem:[%s0 + $0x40] sm:$0xff]
  %v35 = vld [vmem:[%s0 + $0x48] sm:$0xff]
  %v36 = vld [vmem:[%s0 + $0x50] sm:$0xff]
  %v37 = vld [vmem:[%s0 + $0x58] sm:$0xff]
  %v38 = vld [vmem:[%s0 + $0x60] sm:$0xff]
  %v39 = vld [vmem:[%s0 + $0x68] sm:$0xff]
  %v40 = vld [vmem:[%s0 + $0x70] sm:$0xff]
  %v41 = vld [vmem:[%s0 + $0x78] sm:$0xff]
  %v42 = vld [vmem:[%s1] sm:$0xff]
  %v43 = vld [vmem:[%s1 + $0x8] sm:$0xff]
  %v44 = vld [vmem:[%s1 + $0x10] sm:$0xff]
  %v45 = vld [vmem:[%s1 + $0x18] sm:$0xff]
  %v46 = vld [vmem:[%s2] sm:$0xff]
  %v47 = vld [vmem:[%s2 + $0x8] sm:$0xff]
  %v48 = vld [vmem:[%s2 + $0x10] sm:$0xff]
  %v49 = vld [vmem:[%s2 + $0x18] sm:$0xff]
  %51 = vset.pattern.permute.xlu0 0
  %52 = vperm.xlu0 %51, %v46
  %v53 = vpop.permute.xlu0 %52
  %56 = vset.pattern.permute.xlu0 0
  %57 = vperm.xlu0 %56, %v47
  %v58 = vpop.permute.xlu0 %57
  %61 = vset.pattern.permute.xlu0 0
  %62 = vperm.xlu0 %61, %v48
  %v63 = vpop.permute.xlu0 %62
  %66 = vset.pattern.permute.xlu0 0
  %67 = vperm.xlu0 %66, %v49
  %v68 = vpop.permute.xlu0 %67
  %vm70 = vcmask 130048
  %v72 = vsel %vm70, %v42, 0
  %v75 = vsel %vm70, %v43, 0
  %v78 = vsel %vm70, %v44, 0
  %v81 = vsel %vm70, %v45, 0
  %v84 = vsel %vm70, %v26, 0
  %v87 = vsel %vm70, %v27, 0
  %v90 = vsel %vm70, %v28, 0
  %v93 = vsel %vm70, %v29, 0
  %v96 = vsel %vm70, %v30, 0
  %v99 = vsel %vm70, %v31, 0
  %v102 = vsel %vm70, %v32, 0
  %v105 = vsel %vm70, %v33, 0
  %v108 = vsel %vm70, %v34, 0
  %v111 = vsel %vm70, %v35, 0
  %v114 = vsel %vm70, %v36, 0
  %v117 = vsel %vm70, %v37, 0
  %v120 = vsel %vm70, %v38, 0
  %v123 = vsel %vm70, %v39, 0
  %v126 = vsel %vm70, %v40, 0
  %v129 = vsel %vm70, %v41, 0
  %131 = vmatprep.subr.mxu0 0.0
  %132 = vmatpush1.xpose.msra.mxu0 %v84
  %133 = vmatprep.subr.mxu0 0.0
  %134 = vmatpush1.xpose.msra.mxu0 %v87
  %135 = vmatprep.subr.mxu0 0.0
  %136 = vmatpush1.xpose.msra.mxu0 %v90
  %137 = vmatprep.subr.mxu0 0.0
  %138 = vmatpush1.xpose.msra.mxu0 %v93
  %139 = vmatprep.subr.mxu0 0.0
  %140 = vmatpush1.xpose.msra.mxu0 %v96
  %141 = vmatprep.subr.mxu0 0.0
  %142 = vmatpush1.xpose.msra.mxu0 %v99
  %143 = vmatprep.subr.mxu0 0.0
  %144 = vmatpush1.xpose.msra.mxu0 %v102
  %145 = vmatprep.subr.mxu0 0.0
  %146 = vmatpush1.xpose.msra.mxu0 %v105
  %147 = vmatprep.subr.mxu0 0.0
  %148 = vmatpush1.xpose.msra.mxu0 %v108
  %149 = vmatprep.subr.mxu0 0.0
  %150 = vmatpush1.xpose.msra.mxu0 %v111
  %151 = vmatprep.subr.mxu0 0.0
  %152 = vmatpush1.xpose.msra.mxu0 %v114
  %153 = vmatprep.subr.mxu0 0.0
  %154 = vmatpush1.xpose.msra.mxu0 %v117
  %155 = vmatprep.subr.mxu0 0.0
  %156 = vmatpush1.xpose.msra.mxu0 %v120
  %157 = vmatprep.subr.mxu0 0.0
  %158 = vmatpush1.xpose.msra.mxu0 %v123
  %159 = vmatprep.subr.mxu0 0.0
  %160 = vmatpush1.xpose.msra.mxu0 %v126
  %161 = vmatprep.subr.mxu0 0.0
  %162 = vmatpush1.xpose.msra.mxu0 %v129
  %163 = vmatprep.subr.mxu0 0.0
  %164 = vmatpush1.xpose.msra.mxu0 0.0
  %165 = vmatprep.subr.mxu0 0.0
  %166 = vmatpush1.xpose.msra.mxu0 0.0
  %167 = vmatprep.subr.mxu0 0.0
  %168 = vmatpush1.xpose.msra.mxu0 0.0
  %169 = vmatprep.subr.mxu0 0.0
  %170 = vmatpush1.xpose.msra.mxu0 0.0
  %171 = vmatprep.subr.mxu0 0.0
  %172 = vmatpush1.xpose.msra.mxu0 0.0
  %173 = vmatprep.subr.mxu0 0.0
  %174 = vmatpush1.xpose.msra.mxu0 0.0
  %175 = vmatprep.subr.mxu0 0.0
  %176 = vmatpush1.xpose.msra.mxu0 0.0
  %177 = vmatprep.subr.mxu0 0.0
  %178 = vmatpush1.xpose.msra.mxu0 0.0
  %179 = vmatprep.subr.mxu0 0.0
  %180 = vmatpush1.xpose.msra.mxu0 0.0
  %181 = vmatprep.subr.mxu0 0.0
  %182 = vmatpush1.xpose.msra.mxu0 0.0
  %183 = vmatprep.subr.mxu0 0.0
  %184 = vmatpush1.xpose.msra.mxu0 0.0
  %185 = vmatprep.subr.mxu0 0.0
  %186 = vmatpush1.xpose.msra.mxu0 0.0
  %187 = vmatprep.subr.mxu0 0.0
  %188 = vmatpush1.xpose.msra.mxu0 0.0
  %189 = vmatprep.subr.mxu0 0.0
  %190 = vmatpush1.xpose.msra.mxu0 0.0
  %191 = vmatprep.subr.mxu0 0.0
  %192 = vmatpush1.xpose.msra.mxu0 0.0
  %193 = vmatprep.subr.mxu0 0.0
  %194 = vmatpush1.xpose.msra.mxu0 0.0
  %195 = vmatprep.mubr.f32.mxu0 0.0
  %196 = vmatmul.mubr.f32.gmra.mrb[0].mxu0 %v72
  %v197 = vpop.f32.mrb[0].mxu0
  %v198 = vadd.f32 %v53, %v197
  %v199 = vpop.f32.mrb[0].mxu0
  %200 = vmatprep.mubr.f32.mxu0 0.0
  %201 = vmatmul.mubr.f32.gmra.mrb[0].mxu0 %v75
  %v202 = vpop.f32.mrb[0].mxu0
  %v203 = vadd.f32 %v58, %v202
  %v204 = vpop.f32.mrb[0].mxu0
  %205 = vmatprep.mubr.f32.mxu0 0.0
  %206 = vmatmul.mubr.f32.gmra.mrb[0].mxu0 %v78
  %v207 = vpop.f32.mrb[0].mxu0
  %v208 = vadd.f32 %v63, %v207
  %v209 = vpop.f32.mrb[0].mxu0
  %210 = vmatprep.mubr.f32.mxu0 0.0
  %211 = vmatmul.mubr.f32.gmra.mrb[0].mxu0 %v81
  %v212 = vpop.f32.mrb[0].mxu0
  %v213 = vadd.f32 %v68, %v212
  %v214 = vpop.f32.mrb[0].mxu0
  %215 = vdwg.mxu0
  %v216 = vadd.f32 %v198, %v203
  %v217 = vadd.f32 %v216, %v208
  %v218 = vadd.f32 %v217, %v213
  %v219 = vrot.slane %v218, 4
  %v220 = vadd.f32 %v218, %v219
  %v221 = vrot.slane %v220, 2
  %v222 = vadd.f32 %v220, %v221
  %v223 = vrot.slane %v222, 1
  %v224 = vadd.f32 %v222, %v223
  %v225 = vmul.f32 %v224, 0.03125
  %v226 = vsub.f32 %v198, %v225
  %v227 = vsub.f32 %v203, %v225
  %v228 = vsub.f32 %v208, %v225
  %v229 = vsub.f32 %v213, %v225
  %v230 = vmul.f32 %v226, %v226
  %v231 = vmul.f32 %v227, %v227
  %v232 = vmul.f32 %v228, %v228
  %v233 = vmul.f32 %v229, %v229
  %v234 = vadd.f32 %v230, %v231
  %v235 = vadd.f32 %v234, %v232
  %v236 = vadd.f32 %v235, %v233
  %v237 = vrot.slane %v236, 4
  %v238 = vadd.f32 %v236, %v237
  %v239 = vrot.slane %v238, 2
  %v240 = vadd.f32 %v238, %v239
  %v241 = vrot.slane %v240, 1
  %v242 = vadd.f32 %v240, %v241
  %v243 = vmul.f32 %v242, 0.03125
  %v244 = vadd.f32 %v243, 1e-05
  %v245 = vrsqrt.pop %v244
  %v246 = vmul.f32 %v226, %v245
  %v247 = vmul.f32 %v227, %v245
  %v248 = vmul.f32 %v228, %v245
  %v249 = vmul.f32 %v229, %v245
  %250 = vset.pattern.permute.xlu0 1
  %251 = vperm.xlu0 %250, %v46
  %v252 = vpop.permute.xlu0 %251
  %254 = vset.pattern.permute.xlu0 1
  %255 = vperm.xlu0 %254, %v47
  %v256 = vpop.permute.xlu0 %255
  %258 = vset.pattern.permute.xlu0 1
  %259 = vperm.xlu0 %258, %v48
  %v260 = vpop.permute.xlu0 %259
  %262 = vset.pattern.permute.xlu0 1
  %263 = vperm.xlu0 %262, %v49
  %v264 = vpop.permute.xlu0 %263
  %v266 = vmul.f32 %v246, %v252
  %v267 = vmul.f32 %v247, %v256
  %v268 = vmul.f32 %v248, %v260
  %v269 = vmul.f32 %v249, %v264
  %270 = vset.pattern.permute.xlu0 2
  %271 = vperm.xlu0 %270, %v46
  %v272 = vpop.permute.xlu0 %271
  %274 = vset.pattern.permute.xlu0 2
  %275 = vperm.xlu0 %274, %v47
  %v276 = vpop.permute.xlu0 %275
  %278 = vset.pattern.permute.xlu0 2
  %279 = vperm.xlu0 %278, %v48
  %v280 = vpop.permute.xlu0 %279
  %282 = vset.pattern.permute.xlu0 2
  %283 = vperm.xlu0 %282, %v49
  %v284 = vpop.permute.xlu0 %283
  %v286 = vadd.f32 %v266, %v272
  %v287 = vadd.f32 %v267, %v276
  %v288 = vadd.f32 %v268, %v280
  %v289 = vadd.f32 %v269, %v284
  %v290 = vtanh.pop %v286
  %v291 = vtanh.pop %v287
  %v292 = vtanh.pop %v288
  %v293 = vtanh.pop %v289
  %v294 = vld [vmem:[%s3] sm:$0xff]
  %v295 = vld [vmem:[%s3 + $0x8] sm:$0xff]
  %v296 = vld [vmem:[%s3 + $0x10] sm:$0xff]
  %v297 = vld [vmem:[%s3 + $0x18] sm:$0xff]
  %v298 = vld [vmem:[%s4] sm:$0xff]
  %v299 = vld [vmem:[%s4 + $0x8] sm:$0xff]
  %v300 = vld [vmem:[%s4 + $0x10] sm:$0xff]
  %v301 = vld [vmem:[%s4 + $0x18] sm:$0xff]
  %303 = vset.pattern.permute.xlu0 0
  %304 = vperm.xlu0 %303, %v298
  %v305 = vpop.permute.xlu0 %304
  %308 = vset.pattern.permute.xlu0 0
  %309 = vperm.xlu0 %308, %v299
  %v310 = vpop.permute.xlu0 %309
  %313 = vset.pattern.permute.xlu0 0
  %314 = vperm.xlu0 %313, %v300
  %v315 = vpop.permute.xlu0 %314
  %318 = vset.pattern.permute.xlu0 0
  %319 = vperm.xlu0 %318, %v301
  %v320 = vpop.permute.xlu0 %319
  %vm322 = vcmask 261120
  %v324 = vsel %vm322, %v294, 0
  %v327 = vsel %vm322, %v295, 0
  %v330 = vsel %vm322, %v296, 0
  %v333 = vsel %vm322, %v297, 0
  %335 = vmatprep.subr.mxu0 0.0
  %336 = vmatpush1.msra.mxu0 %v290
  %337 = vmatprep.subr.mxu0 0.0
  %338 = vmatpush1.msra.mxu0 %v291
  %339 = vmatprep.subr.mxu0 0.0
  %340 = vmatpush1.msra.mxu0 %v292
  %341 = vmatprep.subr.mxu0 0.0
  %342 = vmatpush1.msra.mxu0 %v293
  %343 = vmatprep.subr.mxu0 0.0
  %344 = vmatpush1.msra.mxu0 0.0
  %345 = vmatprep.subr.mxu0 0.0
  %346 = vmatpush1.msra.mxu0 0.0
  %347 = vmatprep.subr.mxu0 0.0
  %348 = vmatpush1.msra.mxu0 0.0
  %349 = vmatprep.subr.mxu0 0.0
  %350 = vmatpush1.msra.mxu0 0.0
  %351 = vmatprep.subr.mxu0 0.0
  %352 = vmatpush1.msra.mxu0 0.0
  %353 = vmatprep.subr.mxu0 0.0
  %354 = vmatpush1.msra.mxu0 0.0
  %355 = vmatprep.subr.mxu0 0.0
  %356 = vmatpush1.msra.mxu0 0.0
  %357 = vmatprep.subr.mxu0 0.0
  %358 = vmatpush1.msra.mxu0 0.0
  %359 = vmatprep.subr.mxu0 0.0
  %360 = vmatpush1.msra.mxu0 0.0
  %361 = vmatprep.subr.mxu0 0.0
  %362 = vmatpush1.msra.mxu0 0.0
  %363 = vmatprep.subr.mxu0 0.0
  %364 = vmatpush1.msra.mxu0 0.0
  %365 = vmatprep.subr.mxu0 0.0
  %366 = vmatpush1.msra.mxu0 0.0
  %367 = vmatprep.subr.mxu0 0.0
  %368 = vmatpush1.msra.mxu0 0.0
  %369 = vmatprep.subr.mxu0 0.0
  %370 = vmatpush1.msra.mxu0 0.0
  %371 = vmatprep.subr.mxu0 0.0
  %372 = vmatpush1.msra.mxu0 0.0
  %373 = vmatprep.subr.mxu0 0.0
  %374 = vmatpush1.msra.mxu0 0.0
  %375 = vmatprep.subr.mxu0 0.0
  %376 = vmatpush1.msra.mxu0 0.0
  %377 = vmatprep.subr.mxu0 0.0
  %378 = vmatpush1.msra.mxu0 0.0
  %379 = vmatprep.subr.mxu0 0.0
  %380 = vmatpush1.msra.mxu0 0.0
  %381 = vmatprep.subr.mxu0 0.0
  %382 = vmatpush1.msra.mxu0 0.0
  %383 = vmatprep.subr.mxu0 0.0
  %384 = vmatpush1.msra.mxu0 0.0
  %385 = vmatprep.subr.mxu0 0.0
  %386 = vmatpush1.msra.mxu0 0.0
  %387 = vmatprep.subr.mxu0 0.0
  %388 = vmatpush1.msra.mxu0 0.0
  %389 = vmatprep.subr.mxu0 0.0
  %390 = vmatpush1.msra.mxu0 0.0
  %391 = vmatprep.subr.mxu0 0.0
  %392 = vmatpush1.msra.mxu0 0.0
  %393 = vmatprep.subr.mxu0 0.0
  %394 = vmatpush1.msra.mxu0 0.0
  %395 = vmatprep.subr.mxu0 0.0
  %396 = vmatpush1.msra.mxu0 0.0
  %397 = vmatprep.subr.mxu0 0.0
  %398 = vmatpush1.msra.mxu0 0.0
  %399 = vmatprep.mubr.f32.mxu0 0.0
  %400 = vmatmul.mubr.f32.gmra.mrb[0].mxu0 %v324
  %v401 = vpop.f32.mrb[0].mxu0
  %v402 = vadd.f32 %v305, %v401
  %v403 = vpop.f32.mrb[0].mxu0
  %404 = vmatprep.mubr.f32.mxu0 0.0
  %405 = vmatmul.mubr.f32.gmra.mrb[0].mxu0 %v327
  %v406 = vpop.f32.mrb[0].mxu0
  %v407 = vadd.f32 %v310, %v406
  %v408 = vpop.f32.mrb[0].mxu0
  %409 = vmatprep.mubr.f32.mxu0 0.0
  %410 = vmatmul.mubr.f32.gmra.mrb[0].mxu0 %v330
  %v411 = vpop.f32.mrb[0].mxu0
  %v412 = vadd.f32 %v315, %v411
  %v413 = vpop.f32.mrb[0].mxu0
  %414 = vmatprep.mubr.f32.mxu0 0.0
  %415 = vmatmul.mubr.f32.gmra.mrb[0].mxu0 %v333
  %v416 = vpop.f32.mrb[0].mxu0
  %v417 = vadd.f32 %v320, %v416
  %v418 = vpop.f32.mrb[0].mxu0
  %419 = vdwg.mxu0
  %v420 = vadd.f32 %v402, %v407
  %v421 = vadd.f32 %v420, %v412
  %v422 = vadd.f32 %v421, %v417
  %v423 = vrot.slane %v422, 4
  %v424 = vadd.f32 %v422, %v423
  %v425 = vrot.slane %v424, 2
  %v426 = vadd.f32 %v424, %v425
  %v427 = vrot.slane %v426, 1
  %v428 = vadd.f32 %v426, %v427
  %v429 = vmul.f32 %v428, 0.03125
  %v430 = vsub.f32 %v402, %v429
  %v431 = vsub.f32 %v407, %v429
  %v432 = vsub.f32 %v412, %v429
  %v433 = vsub.f32 %v417, %v429
  %v434 = vmul.f32 %v430, %v430
  %v435 = vmul.f32 %v431, %v431
  %v436 = vmul.f32 %v432, %v432
  %v437 = vmul.f32 %v433, %v433
  %v438 = vadd.f32 %v434, %v435
  %v439 = vadd.f32 %v438, %v436
  %v440 = vadd.f32 %v439, %v437
  %v441 = vrot.slane %v440, 4
  %v442 = vadd.f32 %v440, %v441
  %v443 = vrot.slane %v442, 2
  %v444 = vadd.f32 %v442, %v443
  %v445 = vrot.slane %v444, 1
  %v446 = vadd.f32 %v444, %v445
  %v447 = vmul.f32 %v446, 0.03125
  %v448 = vadd.f32 %v447, 1e-05
  %v449 = vrsqrt.pop %v448
  %v450 = vmul.f32 %v430, %v449
  %v451 = vmul.f32 %v431, %v449
  %v452 = vmul.f32 %v432, %v449
  %v453 = vmul.f32 %v433, %v449
  %454 = vset.pattern.permute.xlu0 1
  %455 = vperm.xlu0 %454, %v298
  %v456 = vpop.permute.xlu0 %455
  %458 = vset.pattern.permute.xlu0 1
  %459 = vperm.xlu0 %458, %v299
  %v460 = vpop.permute.xlu0 %459
  %462 = vset.pattern.permute.xlu0 1
  %463 = vperm.xlu0 %462, %v300
  %v464 = vpop.permute.xlu0 %463
  %466 = vset.pattern.permute.xlu0 1
  %467 = vperm.xlu0 %466, %v301
  %v468 = vpop.permute.xlu0 %467
  %v470 = vmul.f32 %v450, %v456
  %v471 = vmul.f32 %v451, %v460
  %v472 = vmul.f32 %v452, %v464
  %v473 = vmul.f32 %v453, %v468
  %474 = vset.pattern.permute.xlu0 2
  %475 = vperm.xlu0 %474, %v298
  %v476 = vpop.permute.xlu0 %475
  %478 = vset.pattern.permute.xlu0 2
  %479 = vperm.xlu0 %478, %v299
  %v480 = vpop.permute.xlu0 %479
  %482 = vset.pattern.permute.xlu0 2
  %483 = vperm.xlu0 %482, %v300
  %v484 = vpop.permute.xlu0 %483
  %486 = vset.pattern.permute.xlu0 2
  %487 = vperm.xlu0 %486, %v301
  %v488 = vpop.permute.xlu0 %487
  %v490 = vadd.f32 %v470, %v476
  %v491 = vadd.f32 %v471, %v480
  %v492 = vadd.f32 %v472, %v484
  %v493 = vadd.f32 %v473, %v488
  %v494 = vtanh.pop %v490
  %v495 = vtanh.pop %v491
  %v496 = vtanh.pop %v492
  %v497 = vtanh.pop %v493
  %v498 = vld [vmem:[%s5] sm:$0xff]
  %v499 = vld [vmem:[%s5 + $0x8] sm:$0xff]
  %v500 = vld [vmem:[%s6] sm:$0xff]
  %v501 = vld [vmem:[%s6 + $0x8] sm:$0xff]
  %503 = vset.pattern.permute.xlu0 0
  %504 = vperm.xlu0 %503, %v500
  %v505 = vpop.permute.xlu0 %504
  %508 = vset.pattern.permute.xlu0 0
  %509 = vperm.xlu0 %508, %v501
  %v510 = vpop.permute.xlu0 %509
  %v513 = vsel %vm322, %v498, 0
  %v516 = vsel %vm322, %v499, 0
  %518 = vmatprep.subr.mxu0 0.0
  %519 = vmatpush1.msra.mxu0 %v494
  %520 = vmatprep.subr.mxu0 0.0
  %521 = vmatpush1.msra.mxu0 %v495
  %522 = vmatprep.subr.mxu0 0.0
  %523 = vmatpush1.msra.mxu0 %v496
  %524 = vmatprep.subr.mxu0 0.0
  %525 = vmatpush1.msra.mxu0 %v497
  %526 = vmatprep.subr.mxu0 0.0
  %527 = vmatpush1.msra.mxu0 0.0
  %528 = vmatprep.subr.mxu0 0.0
  %529 = vmatpush1.msra.mxu0 0.0
  %530 = vmatprep.subr.mxu0 0.0
  %531 = vmatpush1.msra.mxu0 0.0
  %532 = vmatprep.subr.mxu0 0.0
  %533 = vmatpush1.msra.mxu0 0.0
  %534 = vmatprep.subr.mxu0 0.0
  %535 = vmatpush1.msra.mxu0 0.0
  %536 = vmatprep.subr.mxu0 0.0
  %537 = vmatpush1.msra.mxu0 0.0
  %538 = vmatprep.subr.mxu0 0.0
  %539 = vmatpush1.msra.mxu0 0.0
  %540 = vmatprep.subr.mxu0 0.0
  %541 = vmatpush1.msra.mxu0 0.0
  %542 = vmatprep.subr.mxu0 0.0
  %543 = vmatpush1.msra.mxu0 0.0
  %544 = vmatprep.subr.mxu0 0.0
  %545 = vmatpush1.msra.mxu0 0.0
  %546 = vmatprep.subr.mxu0 0.0
  %547 = vmatpush1.msra.mxu0 0.0
  %548 = vmatprep.subr.mxu0 0.0
  %549 = vmatpush1.msra.mxu0 0.0
  %550 = vmatprep.subr.mxu0 0.0
  %551 = vmatpush1.msra.mxu0 0.0
  %552 = vmatprep.subr.mxu0 0.0
  %553 = vmatpush1.msra.mxu0 0.0
  %554 = vmatprep.subr.mxu0 0.0
  %555 = vmatpush1.msra.mxu0 0.0
  %556 = vmatprep.subr.mxu0 0.0
  %557 = vmatpush1.msra.mxu0 0.0
  %558 = vmatprep.subr.mxu0 0.0
  %559 = vmatpush1.msra.mxu0 0.0
  %560 = vmatprep.subr.mxu0 0.0
  %561 = vmatpush1.msra.mxu0 0.0
  %562 = vmatprep.subr.mxu0 0.0
  %563 = vmatpush1.msra.mxu0 0.0
  %564 = vmatprep.subr.mxu0 0.0
  %565 = vmatpush1.msra.mxu0 0.0
  %566 = vmatprep.subr.mxu0 0.0
  %567 = vmatpush1.msra.mxu0 0.0
  %568 = vmatprep.subr.mxu0 0.0
  %569 = vmatpush1.msra.mxu0 0.0
  %570 = vmatprep.subr.mxu0 0.0
  %571 = vmatpush1.msra.mxu0 0.0
  %572 = vmatprep.subr.mxu0 0.0
  %573 = vmatpush1.msra.mxu0 0.0
  %574 = vmatprep.subr.mxu0 0.0
  %575 = vmatpush1.msra.mxu0 0.0
  %576 = vmatprep.subr.mxu0 0.0
  %577 = vmatpush1.msra.mxu0 0.0
  %578 = vmatprep.subr.mxu0 0.0
  %579 = vmatpush1.msra.mxu0 0.0
  %580 = vmatprep.subr.mxu0 0.0
  %581 = vmatpush1.msra.mxu0 0.0
  %582 = vmatprep.mubr.f32.mxu0 0.0
  %583 = vmatmul.mubr.f32.gmra.mrb[0].mxu0 %v513
  %v584 = vpop.f32.mrb[0].mxu0
  %v585 = vadd.f32 %v505, %v584
  %v586 = vpop.f32.mrb[0].mxu0
  %587 = vmatprep.mubr.f32.mxu0 0.0
  %588 = vmatmul.mubr.f32.gmra.mrb[0].mxu0 %v516
  %v589 = vpop.f32.mrb[0].mxu0
  %v590 = vadd.f32 %v510, %v589
  %v591 = vpop.f32.mrb[0].mxu0
  %592 = vdwg.mxu0
  %593 = vxpose.xlu0.b32.start [1/16] %v585, 128
  %594 = vxpose.xlu0.b32.cont [2/16] %v590, 128
  %595 = vxpose.xlu0.b32.cont [3/16] 0.0, 128
  %596 = vxpose.xlu0.b32.cont [4/16] 0.0, 128
  %597 = vxpose.xlu0.b32.cont [5/16] 0.0, 128
  %598 = vxpose.xlu0.b32.cont [6/16] 0.0, 128
  %599 = vxpose.xlu0.b32.cont [7/16] 0.0, 128
  %600 = vxpose.xlu0.b32.cont [8/16] 0.0, 128
  %601 = vxpose.xlu0.b32.cont [9/16] 0.0, 128
  %602 = vxpose.xlu0.b32.cont [10/16] 0.0, 128
  %603 = vxpose.xlu0.b32.cont [11/16] 0.0, 128
  %604 = vxpose.xlu0.b32.cont [12/16] 0.0, 128
  %605 = vxpose.xlu0.b32.cont [13/16] 0.0, 128
  %606 = vxpose.xlu0.b32.cont [14/16] 0.0, 128
  %607 = vxpose.xlu0.b32.cont [15/16] 0.0, 128
  %608 = vxpose.xlu0.b32.end [16/16] 0.0, 128
  %v609 = vpop.trf.xlu0
  %v610 = vpop.trf.xlu0
  %v611 = vpop.trf.xlu0
  %v612 = vpop.trf.xlu0
  %v613 = vpop.trf.xlu0
  %v614 = vpop.trf.xlu0
  %v615 = vpop.trf.xlu0
  %v616 = vpop.trf.xlu0
  %v617 = vpop.trf.xlu0
  %v618 = vpop.trf.xlu0
  %v619 = vpop.trf.xlu0
  %v620 = vpop.trf.xlu0
  %v621 = vpop.trf.xlu0
  %v622 = vpop.trf.xlu0
  %v623 = vpop.trf.xlu0
  %v624 = vpop.trf.xlu0
  %625 = vst.msk [vmem:[%s7] sm:$0xff] %vm70, %v609
  %626 = vst.msk [vmem:[%s7 + $0x8] sm:$0xff] %vm70, %v610
  %627 = vst.msk [vmem:[%s7 + $0x10] sm:$0xff] %vm70, %v611
  %628 = vst.msk [vmem:[%s7 + $0x18] sm:$0xff] %vm70, %v612
  %629 = vst.msk [vmem:[%s7 + $0x20] sm:$0xff] %vm70, %v613
  %630 = vst.msk [vmem:[%s7 + $0x28] sm:$0xff] %vm70, %v614
  %631 = vst.msk [vmem:[%s7 + $0x30] sm:$0xff] %vm70, %v615
  %632 = vst.msk [vmem:[%s7 + $0x38] sm:$0xff] %vm70, %v616
  %633 = vst.msk [vmem:[%s7 + $0x40] sm:$0xff] %vm70, %v617
  %634 = vst.msk [vmem:[%s7 + $0x48] sm:$0xff] %vm70, %v618
  %635 = vst.msk [vmem:[%s7 + $0x50] sm:$0xff] %vm70, %v619
  %636 = vst.msk [vmem:[%s7 + $0x58] sm:$0xff] %vm70, %v620
  %637 = vst.msk [vmem:[%s7 + $0x60] sm:$0xff] %vm70, %v621
  %638 = vst.msk [vmem:[%s7 + $0x68] sm:$0xff] %vm70, %v622
  %639 = vst.msk [vmem:[%s7 + $0x70] sm:$0xff] %vm70, %v623
  %640 = vst.msk [vmem:[%s7 + $0x78] sm:$0xff] %vm70, %v624
  // Predicated region
  $region30: #{tpu_custom_call.1} parent=0 // pred_check
    _
  $region31: #{tpu_custom_call.1} parent=0 // pred_check_branch
    %642 = sbr.rel (0) target = $region33
  $region32: #{tpu_custom_call.1} parent=0 // pred_region
    _
  $region33: #{tpu_custom_call.1} parent=0 // pred_fallthru
    _
  // Predicated region
  $region34: #{tpu_custom_call.1} parent=0 // pred_check
    _
  $region35: #{tpu_custom_call.1} parent=0 // pred_check_branch
    %644 = sbr.rel (0) target = $region37
  $region36: #{tpu_custom_call.1} parent=0 // pred_region
    _
  $region37: #{tpu_custom_call.1} parent=0 // pred_fallthru
    _

</llo_original>
